<compile_context>
chip_gen: v7x
topology: tpu7x:2x2x1
jax: 0.10.0
libtpu: 0.0.40
codegen_flags: <defaults>
</compile_context>

<pallas_src>
import functools

import jax
import jax.numpy as jnp
from jax.experimental import pallas as pl
from jax.experimental.pallas import tpu as pltpu


def basic_block_kernel(x_ref, scale_ref, shift_ref, w_ref, mask_ref, out_ref,
                       *, H, W, C_in, C_out, NB, matmul_dtype):
    """NB batch images per grid step; channels-on-sublane, (H*W)-on-lane.

    x_ref     : (NB, C_in, H*W)       f32 input images (flattened spatial)
    scale_ref : (C_in, 1)             folded BN scale
    shift_ref : (C_in, 1)             folded BN shift
    w_ref     : (C_out, 9*C_in)       conv weight, fused-contraction layout
    mask_ref  : (9, H*W)              per-tap edge masks (0/1, matmul_dtype)
    out_ref   : (NB, C_in+C_out, H*W) fused [x ; conv_out] output block
    """
    HW = H * W
    w2d = w_ref[...]          # (C_out, 9*C_in); loaded once, stays in vregs
    masks = mask_ref[...]     # (9, HW); loaded once

    for i in range(NB):       # NB is small and static -> unrolled
        x_img = x_ref[i]                                   # (C_in, HW) f32
        # BN (inference, folded) + ReLU in f32 (v5e has no bf16 VPU/EUP),
        # then one cast to the MXU feed dtype.
        y = jnp.maximum(x_img * scale_ref[...] + shift_ref[...], 0.0)
        y = y.astype(matmul_dtype)

        # Build the (9*C_in, HW) patch: per tap a lane-rotation (XLU) plus an
        # edge-mask multiply (VPU), stacked along the contraction axis so the
        # MXU runs a single K = 9*C_in matmul.
        taps = []
        for kh in range(3):
            for kw in range(3):
                dh, dw = kh - 1, kw - 1
                delta = dh * W + dw
                t = kh * 3 + kw
                shifted = y if delta == 0 else pltpu.roll(y, (-delta) % HW, axis=1)
                if dh == 0 and dw == 0:
                    taps.append(shifted)                   # center tap: no mask
                else:
                    taps.append(shifted * masks[t:t + 1, :])
        patch = jnp.concatenate(taps, axis=0)              # (9*C_in, HW)

        # (C_out, 9*C_in) @ (9*C_in, HW) -> (C_out, HW), f32 accumulation.
        conv = jnp.dot(w2d, patch, preferred_element_type=jnp.float32)

        # Stage the fused [x ; conv] result and store with ONE contiguous
        # write (avoids the masked sublane store starting mid-tile at C_in).
        full = jnp.concatenate([x_img, conv], axis=0)      # (C_tot, HW) f32
        out_ref[i] = full.astype(out_ref.dtype)


def basic_block_forward(x_nchw, gamma, beta, running_mean, running_var,
                        conv_w_oihw, eps=1e-5, drop_rate=0.0,
                        matmul_dtype=jnp.bfloat16, out_dtype=None,
                        images_per_step=None):
    """Pallas implementation of BasicBlock.forward (inference semantics).

    matmul_dtype=bfloat16 (default) feeds the MXU at its native rate on
    v5e/v6e/v7x with f32 accumulation; pass float32 for strict validation.
    out_dtype defaults to x's dtype (f32) to match torch semantics; bf16 is
    available if downstream tolerates it (halves the dominant HBM write).
    """
    N, C_in, H, W = x_nchw.shape
    C_out = conv_w_oihw.shape[0]
    HW = H * W
    C_tot = C_in + C_out
    out_dtype = x_nchw.dtype if out_dtype is None else out_dtype

    # --- glue: cheap reshapes + parameter folding (no activation transposes) ---
    x_flat = x_nchw.reshape(N, C_in, HW).astype(jnp.float32)
    inv_std = 1.0 / jnp.sqrt(running_var + eps)
    scale = (gamma * inv_std).reshape(C_in, 1).astype(jnp.float32)
    shift = (beta - running_mean * gamma * inv_std).reshape(C_in, 1).astype(jnp.float32)

    # OIHW -> (C_out, kh, kw, C_in) -> (C_out, 9*C_in): fused-contraction weight.
    w2d = jnp.transpose(conv_w_oihw, (0, 2, 3, 1)).reshape(C_out, 9 * C_in)
    w2d = w2d.astype(matmul_dtype)

    # Precompute the 9 per-tap edge masks once (hoisted out of the kernel).
    hw = jnp.arange(HW, dtype=jnp.int32)
    row, col = hw // W, hw % W
    tap_masks = []
    for kh in range(3):
        for kw in range(3):
            dh, dw = kh - 1, kw - 1
            m = jnp.ones((HW,), dtype=bool)
            if dh == -1:
                m = m & (row >= 1)
            elif dh == 1:
                m = m & (row < H - 1)
            if dw == -1:
                m = m & (col >= 1)
            elif dw == 1:
                m = m & (col < W - 1)
            tap_masks.append(m)
    mask9 = jnp.stack(tap_masks, axis=0).astype(matmul_dtype)      # (9, HW)

    # Pick images-per-step: amortize ~0.35 us grid-step overhead, keep >=2 grid
    # blocks for v7x's two TensorCores, cap per-step footprint for v7x VMEM.
    if images_per_step is None:
        per_img_bytes = (C_in + C_tot) * HW * 4 * 2     # in + out, double-buffered
        nb_cap = max(1, (8 * 1024 * 1024) // per_img_bytes)
        grid_len = max(2 if N >= 2 else 1, -(-N // nb_cap))
        NB = -(-N // grid_len)
    else:
        NB = max(1, int(images_per_step))
    grid_len = -(-N // NB)
    n_pad = grid_len * NB - N
    if n_pad:
        x_flat = jnp.pad(x_flat, ((0, n_pad), (0, 0), (0, 0)))

    kernel = functools.partial(basic_block_kernel, H=H, W=W, C_in=C_in,
                               C_out=C_out, NB=NB, matmul_dtype=matmul_dtype)

    wbytes = jnp.dtype(matmul_dtype).itemsize
    obytes = jnp.dtype(out_dtype).itemsize
    flops = 2 * N * HW * 9 * C_in * C_out + 4 * N * C_in * HW
    bytes_accessed = (N * C_in * HW * 4            # x read
                      + N * C_tot * HW * obytes    # fused output write
                      + 9 * C_out * C_in * wbytes  # weight
                      + 9 * HW * wbytes            # masks
                      + 2 * C_in * 4)              # scale/shift

    out_flat = pl.pallas_call(
        kernel,
        out_shape=jax.ShapeDtypeStruct((grid_len * NB, C_tot, HW), out_dtype),
        grid=(grid_len,),
        in_specs=[
            pl.BlockSpec((NB, C_in, HW), lambda g: (g, 0, 0)),
            pl.BlockSpec((C_in, 1), lambda g: (0, 0)),
            pl.BlockSpec((C_in, 1), lambda g: (0, 0)),
            pl.BlockSpec((C_out, 9 * C_in), lambda g: (0, 0)),
            pl.BlockSpec((9, HW), lambda g: (0, 0)),
        ],
        out_specs=pl.BlockSpec((NB, C_tot, HW), lambda g: (g, 0, 0)),
        compiler_params=pltpu.CompilerParams(
            dimension_semantics=("parallel",),       # batch blocks independent
            vmem_limit_bytes=32 * 1024 * 1024,
        ),
        cost_estimate=pl.CostEstimate(
            flops=int(flops), transcendentals=0,
            bytes_accessed=int(bytes_accessed)),
    )(x_flat, scale, shift, w2d, mask9)

    if n_pad:
        out_flat = out_flat[:N]
    # dropRate == 0.0 by default -> no dropout (matches torch forward).
    return out_flat.reshape(N, C_tot, H, W)


def reference_forward(x_nchw, gamma, beta, running_mean, running_var,
                      conv_w_oihw, eps=1e-5):
    """Pure-JAX reference (same math as the PyTorch module in eval mode)."""
    inv_std = 1.0 / jnp.sqrt(running_var + eps)
    scale = (gamma * inv_std)[None, :, None, None]
    shift = (beta - running_mean * gamma * inv_std)[None, :, None, None]
    y = jnp.maximum(x_nchw * scale + shift, 0.0)
    out = jax.lax.conv_general_dilated(
        y, conv_w_oihw, window_strides=(1, 1), padding=((1, 1), (1, 1)),
        dimension_numbers=("NCHW", "OIHW", "NCHW"))
    return jnp.concatenate([x_nchw, out], axis=1)


if __name__ == "__main__":
    N, C_in, H, W = 2, 4, 16, 16
    C_out = 8

    key = jax.random.PRNGKey(0)
    kx, kg, kb, km, kv, kw = jax.random.split(key, 6)

    x = jax.random.normal(kx, (N, C_in, H, W), jnp.float32)
    gamma = 1.0 + 0.1 * jax.random.normal(kg, (C_in,), jnp.float32)
    beta = 0.1 * jax.random.normal(kb, (C_in,), jnp.float32)
    running_mean = 0.1 * jax.random.normal(km, (C_in,), jnp.float32)
    running_var = jnp.abs(1.0 + 0.1 * jax.random.normal(kv, (C_in,), jnp.float32))
    conv_w = 0.1 * jax.random.normal(kw, (C_out, C_in, 3, 3), jnp.float32)

    ref = jax.block_until_ready(
        reference_forward(x, gamma, beta, running_mean, running_var, conv_w))

    # Strict check with f32 MXU feed.
    out_f32 = jax.block_until_ready(
        basic_block_forward(x, gamma, beta, running_mean, running_var, conv_w,
                            matmul_dtype=jnp.float32))
    assert out_f32.shape == (N, C_in + C_out, H, W), out_f32.shape
    if not jnp.allclose(out_f32, ref, rtol=1e-4, atol=1e-4):
        raise AssertionError("Pallas f32 output does not match reference")

    # Performance-default path: bf16 MXU feed (f32 accumulation), looser tolerance.
    out_bf16 = jax.block_until_ready(
        basic_block_forward(x, gamma, beta, running_mean, running_var, conv_w))
    if not jnp.allclose(out_bf16, ref, rtol=5e-2, atol=5e-2):
        raise AssertionError("Pallas bf16 output does not match reference")

    print("KERNEL_OK")
</pallas_src>

<mosaic_0001>
module attributes {stable_mosaic.version = 11 : i64} {
  func.func @basic_block_kernel(%arg0: i32, %arg1: memref<1x4x256xf32, #tpu.memory_space<vmem>>, %arg2: memref<4x1xf32, #tpu.memory_space<vmem>>, %arg3: memref<4x1xf32, #tpu.memory_space<vmem>>, %arg4: memref<8x36xf32, #tpu.memory_space<vmem>>, %arg5: memref<9x256xf32, #tpu.memory_space<vmem>>, %arg6: memref<1x12x256xf32, #tpu.memory_space<vmem>>) attributes {dimension_semantics = [#tpu.dimension_semantics<parallel>], iteration_bounds = array<i64: 2>, scalar_prefetch = 0 : i64, scratch_operands = 0 : i64, tpu.core_type = #tpu.core_type<tc>, window_params = [{transform_indices = @transform_0, window_bounds = array<i64: 1, 4, 256>}, {pipeline_mode = #tpu.pipeline_mode<synchronous>, transform_indices = @transform_1, window_bounds = array<i64: 4, 1>}, {pipeline_mode = #tpu.pipeline_mode<synchronous>, transform_indices = @transform_2, window_bounds = array<i64: 4, 1>}, {pipeline_mode = #tpu.pipeline_mode<synchronous>, transform_indices = @transform_3, window_bounds = array<i64: 8, 36>}, {pipeline_mode = #tpu.pipeline_mode<synchronous>, transform_indices = @transform_4, window_bounds = array<i64: 9, 256>}, {transform_indices = @transform_5, window_bounds = array<i64: 1, 12, 256>}]} {
    %c0 = arith.constant 0 : index
    %c0_0 = arith.constant 0 : index
    %0 = vector.load %arg4[%c0, %c0_0] : memref<8x36xf32, #tpu.memory_space<vmem>>, vector<8x36xf32>
    %c0_1 = arith.constant 0 : index
    %c0_2 = arith.constant 0 : index
    %1 = vector.load %arg5[%c0_1, %c0_2] : memref<9x256xf32, #tpu.memory_space<vmem>>, vector<9x256xf32>
    %c0_3 = arith.constant 0 : index
    %c0_4 = arith.constant 0 : index
    %c0_5 = arith.constant 0 : index
    %2 = vector.load %arg1[%c0_3, %c0_4, %c0_5] : memref<1x4x256xf32, #tpu.memory_space<vmem>>, vector<1x4x256xf32>
    %3 = vector.shape_cast %2 : vector<1x4x256xf32> to vector<4x256xf32>
    %c0_6 = arith.constant 0 : index
    %c0_7 = arith.constant 0 : index
    %4 = vector.load %arg2[%c0_6, %c0_7] : memref<4x1xf32, #tpu.memory_space<vmem>>, vector<4x1xf32>
    %5 = vector.broadcast %4 : vector<4x1xf32> to vector<4x256xf32>
    %6 = arith.mulf %3, %5 : vector<4x256xf32>
    %c0_8 = arith.constant 0 : index
    %c0_9 = arith.constant 0 : index
    %7 = vector.load %arg3[%c0_8, %c0_9] : memref<4x1xf32, #tpu.memory_space<vmem>>, vector<4x1xf32>
    %8 = vector.broadcast %7 : vector<4x1xf32> to vector<4x256xf32>
    %9 = arith.addf %6, %8 : vector<4x256xf32>
    %cst = arith.constant 0.000000e+00 : f32
    %10 = vector.broadcast %cst : f32 to vector<4x256xf32>
    %11 = arith.maximumf %9, %10 : vector<4x256xf32>
    %c17_i32 = arith.constant 17 : i32
    %12 = tpu.dynamic_rotate %11 by %c17_i32 dim 1 : vector<4x256xf32>, i32 -> vector<4x256xf32>
    %13 = vector.extract_strided_slice %1 {offsets = [0, 0], sizes = [1, 256], strides = [1, 1]} : vector<9x256xf32> to vector<1x256xf32>
    %14 = vector.broadcast %13 : vector<1x256xf32> to vector<4x256xf32>
    %15 = arith.mulf %12, %14 : vector<4x256xf32>
    %c16_i32 = arith.constant 16 : i32
    %16 = tpu.dynamic_rotate %11 by %c16_i32 dim 1 : vector<4x256xf32>, i32 -> vector<4x256xf32>
    %17 = vector.extract_strided_slice %1 {offsets = [1, 0], sizes = [1, 256], strides = [1, 1]} : vector<9x256xf32> to vector<1x256xf32>
    %18 = vector.broadcast %17 : vector<1x256xf32> to vector<4x256xf32>
    %19 = arith.mulf %16, %18 : vector<4x256xf32>
    %c15_i32 = arith.constant 15 : i32
    %20 = tpu.dynamic_rotate %11 by %c15_i32 dim 1 : vector<4x256xf32>, i32 -> vector<4x256xf32>
    %21 = vector.extract_strided_slice %1 {offsets = [2, 0], sizes = [1, 256], strides = [1, 1]} : vector<9x256xf32> to vector<1x256xf32>
    %22 = vector.broadcast %21 : vector<1x256xf32> to vector<4x256xf32>
    %23 = arith.mulf %20, %22 : vector<4x256xf32>
    %c1_i32 = arith.constant 1 : i32
    %24 = tpu.dynamic_rotate %11 by %c1_i32 dim 1 : vector<4x256xf32>, i32 -> vector<4x256xf32>
    %25 = vector.extract_strided_slice %1 {offsets = [3, 0], sizes = [1, 256], strides = [1, 1]} : vector<9x256xf32> to vector<1x256xf32>
    %26 = vector.broadcast %25 : vector<1x256xf32> to vector<4x256xf32>
    %27 = arith.mulf %24, %26 : vector<4x256xf32>
    %c255_i32 = arith.constant 255 : i32
    %28 = tpu.dynamic_rotate %11 by %c255_i32 dim 1 : vector<4x256xf32>, i32 -> vector<4x256xf32>
    %29 = vector.extract_strided_slice %1 {offsets = [5, 0], sizes = [1, 256], strides = [1, 1]} : vector<9x256xf32> to vector<1x256xf32>
    %30 = vector.broadcast %29 : vector<1x256xf32> to vector<4x256xf32>
    %31 = arith.mulf %28, %30 : vector<4x256xf32>
    %c241_i32 = arith.constant 241 : i32
    %32 = tpu.dynamic_rotate %11 by %c241_i32 dim 1 : vector<4x256xf32>, i32 -> vector<4x256xf32>
    %33 = vector.extract_strided_slice %1 {offsets = [6, 0], sizes = [1, 256], strides = [1, 1]} : vector<9x256xf32> to vector<1x256xf32>
    %34 = vector.broadcast %33 : vector<1x256xf32> to vector<4x256xf32>
    %35 = arith.mulf %32, %34 : vector<4x256xf32>
    %c240_i32 = arith.constant 240 : i32
    %36 = tpu.dynamic_rotate %11 by %c240_i32 dim 1 : vector<4x256xf32>, i32 -> vector<4x256xf32>
    %37 = vector.extract_strided_slice %1 {offsets = [7, 0], sizes = [1, 256], strides = [1, 1]} : vector<9x256xf32> to vector<1x256xf32>
    %38 = vector.broadcast %37 : vector<1x256xf32> to vector<4x256xf32>
    %39 = arith.mulf %36, %38 : vector<4x256xf32>
    %c239_i32 = arith.constant 239 : i32
    %40 = tpu.dynamic_rotate %11 by %c239_i32 dim 1 : vector<4x256xf32>, i32 -> vector<4x256xf32>
    %41 = vector.extract_strided_slice %1 {offsets = [8, 0], sizes = [1, 256], strides = [1, 1]} : vector<9x256xf32> to vector<1x256xf32>
    %42 = vector.broadcast %41 : vector<1x256xf32> to vector<4x256xf32>
    %43 = arith.mulf %40, %42 : vector<4x256xf32>
    %44 = tpu.concatenate %15, %19, %23, %27, %11, %31, %35, %39, %43 in 0 : vector<4x256xf32>, vector<4x256xf32>, vector<4x256xf32>, vector<4x256xf32>, vector<4x256xf32>, vector<4x256xf32>, vector<4x256xf32>, vector<4x256xf32>, vector<4x256xf32> -> vector<36x256xf32>
    %cst_10 = arith.constant dense<0.000000e+00> : vector<8x256xf32>
    %45 = tpu.matmul %0, %44, %cst_10 {dimension_numbers = #tpu.dot_dimension_numbers<[1], [0], [0], [1], [0, 0, 1, 1], [], []>} : vector<8x36xf32>, vector<36x256xf32>, vector<8x256xf32> -> vector<8x256xf32>
    %46 = tpu.concatenate %3, %45 in 0 : vector<4x256xf32>, vector<8x256xf32> -> vector<12x256xf32>
    %c0_11 = arith.constant 0 : index
    %c0_12 = arith.constant 0 : index
    %c0_13 = arith.constant 0 : index
    %47 = vector.load %arg6[%c0_11, %c0_12, %c0_13] : memref<1x12x256xf32, #tpu.memory_space<vmem>>, vector<1x12x256xf32>
    %48 = vector.shape_cast %47 : vector<1x12x256xf32> to vector<12x256xf32>
    %49 = vector.shape_cast %46 : vector<12x256xf32> to vector<1x12x256xf32>
    tpu.vector_store %arg6[%c0_11, %c0_12, %c0_13], %49 {strides = array<i32>} : memref<1x12x256xf32, #tpu.memory_space<vmem>>, vector<1x12x256xf32>,
    return
  }
  func.func @transform_0(%arg0: i32) -> (i32, i32, i32) {
    %c0_i32 = arith.constant 0 : i32
    %c0_i32_0 = arith.constant 0 : i32
    %c0_i32_1 = arith.constant 0 : i32
    return %arg0, %c0_i32, %c0_i32_0 : i32, i32, i32
  }
  func.func @transform_1(%arg0: i32) -> (i32, i32) {
    %c0_i32 = arith.constant 0 : i32
    %c0_i32_0 = arith.constant 0 : i32
    %c0_i32_1 = arith.constant 0 : i32
    return %c0_i32, %c0_i32_0 : i32, i32
  }
  func.func @transform_2(%arg0: i32) -> (i32, i32) {
    %c0_i32 = arith.constant 0 : i32
    %c0_i32_0 = arith.constant 0 : i32
    %c0_i32_1 = arith.constant 0 : i32
    return %c0_i32, %c0_i32_0 : i32, i32
  }
  func.func @transform_3(%arg0: i32) -> (i32, i32) {
    %c0_i32 = arith.constant 0 : i32
    %c0_i32_0 = arith.constant 0 : i32
    %c0_i32_1 = arith.constant 0 : i32
    return %c0_i32, %c0_i32_0 : i32, i32
  }
  func.func @transform_4(%arg0: i32) -> (i32, i32) {
    %c0_i32 = arith.constant 0 : i32
    %c0_i32_0 = arith.constant 0 : i32
    %c0_i32_1 = arith.constant 0 : i32
    return %c0_i32, %c0_i32_0 : i32, i32
  }
  func.func @transform_5(%arg0: i32) -> (i32, i32, i32) {
    %c0_i32 = arith.constant 0 : i32
    %c0_i32_0 = arith.constant 0 : i32
    %c0_i32_1 = arith.constant 0 : i32
    return %arg0, %c0_i32, %c0_i32_0 : i32, i32, i32
  }
}

</mosaic_0001>

<llo_original>
// kernel: tpu_custom_call.1
$region0: #{tpu_custom_call.1}
  #allocation0 [shape = 'u32[]', space=smem, size = 0x4, offset = 0x4, fixed_abs, tag = 'smem constant byte address 0x4 - core index']
  #allocation1 [shape = 'u32[144,128]{1,0:T(1,128)}', space=vmem, size = 0x12000, scoped, tag = 'internal scratch']
  %s0 = inlined_call_operand.hbm [shape: f32[2,4,256], index: 0, kind: input, shape index: {}]
  %s1 = inlined_call_operand.vmem [shape: f32[4,1], index: 1, kind: input, shape index: {}]
  %s2 = inlined_call_operand.vmem [shape: f32[4,1], index: 2, kind: input, shape index: {}]
  %s3 = inlined_call_operand.vmem [shape: f32[8,36], index: 3, kind: input, shape index: {}]
  %s4 = inlined_call_operand.hbm [shape: f32[9,256], index: 4, kind: input, shape index: {}]
  %s5 = inlined_call_operand.vmem [shape: f32[2,12,256], index: 5, kind: output, shape index: {}]
  %s6 = sld [smem:[#allocation0]]
  $region61: #{tpu_custom_call.1} parent=0
    _
  %s8 = ssub.s32 1, %s6
  %s9 = scalar_select 0, %s8, %s6
  $region1: #{tpu_custom_call.1} parent=0
    #allocation2 [shape = 'u8[8192]{0}', space=vmem, size = 0x2000, scoped, tag = 'input window, operand 0']
    #allocation3 [shape = 's32[2]{0}', space=sflag, size = 0x8, scoped, tag = 'scoped memory for tpu_custom_call.1']
    #allocation4 [shape = 'u8[16384]{0}', space=vmem, size = 0x4000, scoped, tag = 'input window, operand 4, single buffered']
    #allocation5 [shape = 's32[1]{0}', space=sflag, size = 0x4, scoped, tag = 'scoped memory for tpu_custom_call.1']
    %10 = vsyncpa [#allocation3], 0
    %s11 = scalar_lea.sflag [#allocation3], 1
    %12 = vsyncpa %s11, 0
    %13 = vsyncpa [#allocation5], 0
    loop: start=0, step=1, limit=4
    $region2: #{tpu_custom_call.1} parent=1 // loop_pre_header
      _
    $region3: #{tpu_custom_call.1} parent=1 // loop_header
      %s15 = sphi 0, %s19
      %p16 = scmp.ge.s32.totalorder %s15, 4
      %s25 = sphi 0, %s27
      %s28 = sphi 0, %s25
      %s29 = sphi 0, %s28
      %s45 = sphi 0, %s29
      %s49 = sphi 0, %s49
      %s51 = sphi 0, %s49
      %s52 = sphi 0, %s51
      %s66 = sphi 0, %s52
      %s70 = sphi 0, %s70
      %s72 = sphi 0, %s70
      %s73 = sphi 0, %s72
      %s87 = sphi 0, %s73
      %s91 = sphi 0, %s91
      %s93 = sphi 0, %s91
      %s94 = sphi 0, %s93
      %s108 = sphi 0, %s94
      %s112 = sphi 0, %s112
      %s114 = sphi 0, %s112
      %s115 = sphi 0, %s114
      %s129 = sphi 0, %s115
      %s135 = sphi 0, %s137
      %s138 = sphi 0, %s135
      %s139 = sphi 0, %s138
      %s155 = sphi 0, %s139
    $region4: #{tpu_custom_call.1} parent=1 // loop_header_branch
      %18 = sbr.rel (%p16) target = $region8
    $region5: #{tpu_custom_call.1} parent=1 // loop_body
      %s20 = ssub.s32 %s15, 1
      %s21 = ssub.s32 %s15, 2
      %s22 = sadd.s32 %s15, 1
      %s23 = ssub.s32 %s15, %s22
      %p24 = scmp.eq.s32.totalorder %s23, 0
      %s26 = sadd.s32 %s25, 1
      %s27 = scalar_select %p24, %s25, %s26
      %p30 = pneg %p24
      %p31 = scmp.eq.s32.totalorder %s15, 1
      %p32 = por %p30, %p31
      %p33 = scmp.ne.s32.totalorder %s25, %s28
      %p34 = scmp.eq.s32.totalorder %s15, 0
      %p35 = por %p33, %p34
      %p36 = scmp.ne.s32.totalorder %s25, %s28
      %p37 = scmp.eq.s32.totalorder %s20, 1
      %p38 = por %p36, %p37
      %p39 = scmp.ne.s32.totalorder %s28, %s29
      %p40 = scmp.eq.s32.totalorder %s20, 0
      %p41 = por %p39, %p40
      %p42 = scmp.ne.s32.totalorder %s28, %s29
      %p43 = scmp.eq.s32.totalorder %s21, 1
      %p44 = por %p42, %p43
      %p46 = scmp.ne.s32.totalorder %s29, %s45
      %p47 = scmp.eq.s32.totalorder %s21, 0
      %p48 = por %p46, %p47
      %s50 = sadd.s32 %s49, 1
      %p53 = scmp.eq.s32.totalorder %s15, 1
      %p54 = scmp.ne.s32.totalorder %s49, %s51
      %p55 = scmp.eq.s32.totalorder %s15, 0
      %p56 = por %p54, %p55
      %p57 = scmp.ne.s32.totalorder %s49, %s51
      %p58 = scmp.eq.s32.totalorder %s20, 1
      %p59 = por %p57, %p58
      %p60 = scmp.ne.s32.totalorder %s51, %s52
      %p61 = scmp.eq.s32.totalorder %s20, 0
      %p62 = por %p60, %p61
      %p63 = scmp.ne.s32.totalorder %s51, %s52
      %p64 = scmp.eq.s32.totalorder %s21, 1
      %p65 = por %p63, %p64
      %p67 = scmp.ne.s32.totalorder %s52, %s66
      %p68 = scmp.eq.s32.totalorder %s21, 0
      %p69 = por %p67, %p68
      %s71 = sadd.s32 %s70, 1
      %p74 = scmp.eq.s32.totalorder %s15, 1
      %p75 = scmp.ne.s32.totalorder %s70, %s72
      %p76 = scmp.eq.s32.totalorder %s15, 0
      %p77 = por %p75, %p76
      %p78 = scmp.ne.s32.totalorder %s70, %s72
      %p79 = scmp.eq.s32.totalorder %s20, 1
      %p80 = por %p78, %p79
      %p81 = scmp.ne.s32.totalorder %s72, %s73
      %p82 = scmp.eq.s32.totalorder %s20, 0
      %p83 = por %p81, %p82
      %p84 = scmp.ne.s32.totalorder %s72, %s73
      %p85 = scmp.eq.s32.totalorder %s21, 1
      %p86 = por %p84, %p85
      %p88 = scmp.ne.s32.totalorder %s73, %s87
      %p89 = scmp.eq.s32.totalorder %s21, 0
      %p90 = por %p88, %p89
      %s92 = sadd.s32 %s91, 1
      %p95 = scmp.eq.s32.totalorder %s15, 1
      %p96 = scmp.ne.s32.totalorder %s91, %s93
      %p97 = scmp.eq.s32.totalorder %s15, 0
      %p98 = por %p96, %p97
      %p99 = scmp.ne.s32.totalorder %s91, %s93
      %p100 = scmp.eq.s32.totalorder %s20, 1
      %p101 = por %p99, %p100
      %p102 = scmp.ne.s32.totalorder %s93, %s94
      %p103 = scmp.eq.s32.totalorder %s20, 0
      %p104 = por %p102, %p103
      %p105 = scmp.ne.s32.totalorder %s93, %s94
      %p106 = scmp.eq.s32.totalorder %s21, 1
      %p107 = por %p105, %p106
      %p109 = scmp.ne.s32.totalorder %s94, %s108
      %p110 = scmp.eq.s32.totalorder %s21, 0
      %p111 = por %p109, %p110
      %s113 = sadd.s32 %s112, 1
      %p116 = scmp.eq.s32.totalorder %s15, 1
      %p117 = scmp.ne.s32.totalorder %s112, %s114
      %p118 = scmp.eq.s32.totalorder %s15, 0
      %p119 = por %p117, %p118
      %p120 = scmp.ne.s32.totalorder %s112, %s114
      %p121 = scmp.eq.s32.totalorder %s20, 1
      %p122 = por %p120, %p121
      %p123 = scmp.ne.s32.totalorder %s114, %s115
      %p124 = scmp.eq.s32.totalorder %s20, 0
      %p125 = por %p123, %p124
      %p126 = scmp.ne.s32.totalorder %s114, %s115
      %p127 = scmp.eq.s32.totalorder %s21, 1
      %p128 = por %p126, %p127
      %p130 = scmp.ne.s32.totalorder %s115, %s129
      %p131 = scmp.eq.s32.totalorder %s21, 0
      %p132 = por %p130, %p131
      %s133 = ssub.s32 %s15, %s22
      %p134 = scmp.eq.s32.totalorder %s133, 0
      %s136 = sadd.s32 %s135, 1
      %s137 = scalar_select %p134, %s135, %s136
      %p140 = pneg %p134
      %p141 = scmp.eq.s32.totalorder %s15, 1
      %p142 = por %p140, %p141
      %p143 = scmp.ne.s32.totalorder %s135, %s138
      %p144 = scmp.eq.s32.totalorder %s15, 0
      %p145 = por %p143, %p144
      %p146 = scmp.ne.s32.totalorder %s135, %s138
      %p147 = scmp.eq.s32.totalorder %s20, 1
      %p148 = por %p146, %p147
      %p149 = scmp.ne.s32.totalorder %s138, %s139
      %p150 = scmp.eq.s32.totalorder %s20, 0
      %p151 = por %p149, %p150
      %p152 = scmp.ne.s32.totalorder %s138, %s139
      %p153 = scmp.eq.s32.totalorder %s21, 1
      %p154 = por %p152, %p153
      %p156 = scmp.ne.s32.totalorder %s139, %s155
      %p157 = scmp.eq.s32.totalorder %s21, 0
      %p158 = por %p156, %p157
      %p159 = scmp.le.s32.totalorder 1, %s15
      %p160 = scmp.lt.s32.totalorder %s15, 3
      %p161 = pnand %p159, %p160
      %p162 = pneg %p161
      // Predicated region
      $region9: #{tpu_custom_call.1} parent=5 // pred_check
        _
      $region10: #{tpu_custom_call.1} parent=5 // pred_check_branch
        %164 = sbr.rel (%p161) target = $region12
      $region11: #{tpu_custom_call.1} parent=5 // pred_region
        %s165 = ssub.s32 %s15, 1
        // Predicated region
        $region13: #{tpu_custom_call.1} parent=11 // pred_check
          %p166 = pneg %p62
        $region14: #{tpu_custom_call.1} parent=11 // pred_check_branch
          %168 = sbr.rel (%p166) target = $region16
        $region15: #{tpu_custom_call.1} parent=11 // pred_region
          _
        $region16: #{tpu_custom_call.1} parent=11 // pred_fallthru
          _
        // Predicated region
        $region17: #{tpu_custom_call.1} parent=11 // pred_check
          %p169 = pneg %p83
        $region18: #{tpu_custom_call.1} parent=11 // pred_check_branch
          %171 = sbr.rel (%p169) target = $region20
        $region19: #{tpu_custom_call.1} parent=11 // pred_region
          _
        $region20: #{tpu_custom_call.1} parent=11 // pred_fallthru
          _
        // Predicated region
        $region21: #{tpu_custom_call.1} parent=11 // pred_check
          %p172 = pneg %p104
        $region22: #{tpu_custom_call.1} parent=11 // pred_check_branch
          %174 = sbr.rel (%p172) target = $region24
        $region23: #{tpu_custom_call.1} parent=11 // pred_region
          _
        $region24: #{tpu_custom_call.1} parent=11 // pred_fallthru
          _
        // Predicated region
        $region25: #{tpu_custom_call.1} parent=11 // pred_check
          %p175 = pneg %p125
        $region26: #{tpu_custom_call.1} parent=11 // pred_check_branch
          %177 = sbr.rel (%p175) target = $region28
        $region27: #{tpu_custom_call.1} parent=11 // pred_region
          %s179 = ssub.s32 512, 512
          %180 = vsyncadd [#allocation5], %s179
          %s181 = sshll.u32 [#allocation4], 4
          %s182 = int_to_ptr.vmem [resolvable:$true] %s181
          %187 = dma.hbm_to_vmem [thread:$0]  %s4, 512, %s182, [#allocation5], 256, 256, 16
        $region28: #{tpu_custom_call.1} parent=11 // pred_fallthru
          _
      $region12: #{tpu_custom_call.1} parent=5 // pred_fallthru
        _
      %p188 = scmp.lt.s32.totalorder %s15, 2
      // Predicated region
      $region29: #{tpu_custom_call.1} parent=5 // pred_check
        %p189 = pneg %p188
      $region30: #{tpu_custom_call.1} parent=5 // pred_check_branch
        %191 = sbr.rel (%p189) target = $region32
      $region31: #{tpu_custom_call.1} parent=5 // pred_region
        // Predicated region
        $region33: #{tpu_custom_call.1} parent=31 // pred_check
          %p192 = pneg %p35
        $region34: #{tpu_custom_call.1} parent=31 // pred_check_branch
          %194 = sbr.rel (%p192) target = $region36
        $region35: #{tpu_custom_call.1} parent=31 // pred_region
          %s195 = sand.u32 %s25, 1
          %s196 = scalar_lea.sflag [#allocation3], %s195
          %s197 = sand.u32 %s25, 1
          %s198 = smul.addr %s197, 8
          %s199 = scalar_lea.vmem [#allocation2], %s198
          %s201 = ssub.s32 128, 128
          %202 = vsyncadd %s196, %s201
          %s203 = smul.addr %s15, 2
          %s204 = smul.addr %s203, 64
          %s205 = scalar_lea.hbm %s0, %s204
          %s207 = sshll.u32 %s199, 4
          %s208 = int_to_ptr.vmem [resolvable:$true] %s207
          %210 = dma.hbm_to_vmem [thread:$0]  %s205, 128, %s208, %s196
        $region36: #{tpu_custom_call.1} parent=31 // pred_fallthru
          _
      $region32: #{tpu_custom_call.1} parent=5 // pred_fallthru
        _
      %p211 = scmp.le.s32.totalorder 1, %s15
      %p212 = scmp.lt.s32.totalorder %s15, 3
      %p213 = pnand %p211, %p212
      %p214 = pneg %p213
      // Predicated region
      $region37: #{tpu_custom_call.1} parent=5 // pred_check
        _
      $region38: #{tpu_custom_call.1} parent=5 // pred_check_branch
        %216 = sbr.rel (%p213) target = $region40
      $region39: #{tpu_custom_call.1} parent=5 // pred_region
        %s217 = ssub.s32 %s15, 1
        %s218 = sand.u32 %s28, 1
        %s219 = scalar_lea.sflag [#allocation3], %s218
        %s220 = sand.u32 %s28, 1
        %s221 = smul.addr %s220, 8
        %s222 = scalar_lea.vmem [#allocation2], %s221
        // Predicated region
        $region41: #{tpu_custom_call.1} parent=39 // pred_check
          %p223 = pneg %p41
        $region42: #{tpu_custom_call.1} parent=39 // pred_check_branch
          %225 = sbr.rel (%p223) target = $region44
        $region43: #{tpu_custom_call.1} parent=39 // pred_region
          %226 = dma.done %s219, 128
        $region44: #{tpu_custom_call.1} parent=39 // pred_fallthru
          _
        // Predicated region
        $region45: #{tpu_custom_call.1} parent=39 // pred_check
          %p227 = pneg %p125
        $region46: #{tpu_custom_call.1} parent=39 // pred_check_branch
          %229 = sbr.rel (%p227) target = $region48
        $region47: #{tpu_custom_call.1} parent=39 // pred_region
          %230 = dma.done [#allocation5], 512
        $region48: #{tpu_custom_call.1} parent=39 // pred_fallthru
          _
        %s231 = sand.u32 %s28, 1
        %s232 = scalar_lea.sflag [#allocation3], %s231
        %s233 = sand.u32 %s28, 1
        %s234 = smul.addr %s233, 8
        %s235 = scalar_lea.vmem [#allocation2], %s234
        %p236 = pneg %p41
        %p237 = pneg %p38
        %p238 = pneg %p62
        %p239 = pneg %p59
        %p240 = pneg %p83
        %p241 = pneg %p80
        %p242 = pneg %p104
        %p243 = pneg %p101
        %p244 = pneg %p125
        %p245 = pneg %p122
        %p246 = pneg %p151
        %p247 = pneg %p148
        %p248 = scmp.lt.s32.totalorder %s20, 1
        %s249 = scalar_select %p248, %s20, 1
        %s250 = smul.addr %s249, 4
        %s251 = smul.addr %s250, 8
        %s252 = scalar_lea.vmem %s5, %s251
        %p253 = scmp.lt.s32.totalorder %s20, 1
        %s254 = scalar_select %p253, %s20, 1
        %s255 = smul.addr %s254, 4
        %s256 = smul.addr %s255, 8
        %s257 = scalar_lea.vmem %s5, %s256
        %v258 = vld [vmem:[%s3] sm:$0xff]
        %v259 = vld [vmem:[#allocation4] sm:$0xff]
        %v260 = vld [vmem:[#allocation4 + $0x8] sm:$0xff]
        %v261 = vld [vmem:[#allocation4 + $0x10] sm:$0x1]
        %v262 = vld [vmem:[#allocation4 + $0x18] sm:$0x1]
        %v263 = vld [vmem:[%s222] sm:$0xff]
        %v264 = vld [vmem:[%s1] sm:$0xf]
        %266 = vset.pattern.permute.xlu0 0
        %267 = vperm.xlu0 %266, %v264
        %v268 = vpop.permute.xlu0 %267
        %v270 = vunpack.c.l.s4 839922192
        %v271 = vunpack.c.0.s8 %v270
        %v272 = vlaneseq
        %v273 = vshrl.u32 %v272, 7
        %v274 = vsub.s32 %v271, %v273
        %v275 = vrot.slane %v268, %v274
        %v277 = vmul.f32 %v263, %v275
        %v278 = vld [vmem:[%s2] sm:$0xf]
        %280 = vset.pattern.permute.xlu0 0
        %281 = vperm.xlu0 %280, %v278
        %v282 = vpop.permute.xlu0 %281
        %v284 = vunpack.c.l.s4 839922192
        %v285 = vunpack.c.0.s8 %v284
        %v286 = vlaneseq
        %v287 = vshrl.u32 %v286, 7
        %v288 = vsub.s32 %v285, %v287
        %v289 = vrot.slane %v282, %v288
        %v291 = vadd.f32 %v277, %v289
        %v292 = vmax.f32 %v291, 0.0
        %v294 = vcombine.high %v292, %v292
        %296 = vrot.lane.b32.xlu0 %v292, 17
        %v297 = vpop.permute.xlu0 %296
        %298 = vrot.lane.b32.xlu0 %v294, 17
        %v299 = vpop.permute.xlu0 %298
        %v300 = vlaneseq
        %v301 = vand.u32 %v300, 127
        %vm302 = vcmp.lt.s32.totalorder %v301, 17
        %v303 = vsel %vm302, %v297, %v299
        %v304 = vsel %vm302, %v299, %v297
        %v305 = vlaneseq
        %v306 = vshrl.u32 %v305, 7
        %v307 = vsub.s32 0, %v306
        %v308 = vrot.slane %v259, %v307
        %v309 = vlaneseq
        %v310 = vshrl.u32 %v309, 7
        %v311 = vsub.s32 0, %v310
        %v312 = vrot.slane %v260, %v311
        %v313 = vmul.f32 %v304, %v308
        %v314 = vmul.f32 %v303, %v312
        %315 = vrot.lane.b32.xlu0 %v292, 16
        %v316 = vpop.permute.xlu0 %315
        %317 = vrot.lane.b32.xlu0 %v294, 16
        %v318 = vpop.permute.xlu0 %317
        %vm319 = vcmp.lt.s32.totalorder %v301, 16
        %v320 = vsel %vm319, %v316, %v318
        %v321 = vsel %vm319, %v318, %v316
        %v322 = vlaneseq
        %v323 = vshrl.u32 %v322, 7
        %v324 = vsub.s32 1, %v323
        %v325 = vrot.slane %v259, %v324
        %v326 = vlaneseq
        %v327 = vshrl.u32 %v326, 7
        %v328 = vsub.s32 1, %v327
        %v329 = vrot.slane %v260, %v328
        %v330 = vmul.f32 %v321, %v325
        %v331 = vmul.f32 %v320, %v329
        %332 = vrot.lane.b32.xlu0 %v292, 15
        %v333 = vpop.permute.xlu0 %332
        %334 = vrot.lane.b32.xlu0 %v294, 15
        %v335 = vpop.permute.xlu0 %334
        %vm336 = vcmp.lt.s32.totalorder %v301, 15
        %v337 = vsel %vm336, %v333, %v335
        %v338 = vsel %vm336, %v335, %v333
        %v339 = vlaneseq
        %v340 = vshrl.u32 %v339, 7
        %v341 = vsub.s32 2, %v340
        %v342 = vrot.slane %v259, %v341
        %v343 = vlaneseq
        %v344 = vshrl.u32 %v343, 7
        %v345 = vsub.s32 2, %v344
        %v346 = vrot.slane %v260, %v345
        %v347 = vmul.f32 %v338, %v342
        %v348 = vmul.f32 %v337, %v346
        %349 = vrot.lane.b32.xlu0 %v292, 1
        %v350 = vpop.permute.xlu0 %349
        %351 = vrot.lane.b32.xlu0 %v294, 1
        %v352 = vpop.permute.xlu0 %351
        %vm353 = vcmp.lt.s32.totalorder %v301, 1
        %v354 = vsel %vm353, %v350, %v352
        %v355 = vsel %vm353, %v352, %v350
        %v356 = vlaneseq
        %v357 = vshrl.u32 %v356, 7
        %v358 = vsub.s32 3, %v357
        %v359 = vrot.slane %v259, %v358
        %v360 = vlaneseq
        %v361 = vshrl.u32 %v360, 7
        %v362 = vsub.s32 3, %v361
        %v363 = vrot.slane %v260, %v362
        %v364 = vmul.f32 %v355, %v359
        %v365 = vmul.f32 %v354, %v363
        %366 = vrot.lane.b32.xlu0 %v292, 127
        %v367 = vpop.permute.xlu0 %366
        %368 = vrot.lane.b32.xlu0 %v294, 127
        %v369 = vpop.permute.xlu0 %368
        %vm370 = vcmp.lt.s32.totalorder %v301, 127
        %v371 = vsel %vm370, %v367, %v369
        %v372 = vsel %vm370, %v369, %v367
        %v373 = vlaneseq
        %v374 = vshrl.u32 %v373, 7
        %v375 = vsub.s32 5, %v374
        %v376 = vrot.slane %v259, %v375
        %v377 = vlaneseq
        %v378 = vshrl.u32 %v377, 7
        %v379 = vsub.s32 5, %v378
        %v380 = vrot.slane %v260, %v379
        %v381 = vmul.f32 %v371, %v376
        %v382 = vmul.f32 %v372, %v380
        %383 = vrot.lane.b32.xlu0 %v292, 113
        %v384 = vpop.permute.xlu0 %383
        %385 = vrot.lane.b32.xlu0 %v294, 113
        %v386 = vpop.permute.xlu0 %385
        %vm387 = vcmp.lt.s32.totalorder %v301, 113
        %v388 = vsel %vm387, %v384, %v386
        %v389 = vsel %vm387, %v386, %v384
        %v390 = vlaneseq
        %v391 = vshrl.u32 %v390, 7
        %v392 = vsub.s32 6, %v391
        %v393 = vrot.slane %v259, %v392
        %v394 = vlaneseq
        %v395 = vshrl.u32 %v394, 7
        %v396 = vsub.s32 6, %v395
        %v397 = vrot.slane %v260, %v396
        %v398 = vmul.f32 %v388, %v393
        %v399 = vmul.f32 %v389, %v397
        %400 = vrot.lane.b32.xlu0 %v292, 112
        %v401 = vpop.permute.xlu0 %400
        %402 = vrot.lane.b32.xlu0 %v294, 112
        %v403 = vpop.permute.xlu0 %402
        %vm404 = vcmp.lt.s32.totalorder %v301, 112
        %v405 = vsel %vm404, %v401, %v403
        %v406 = vsel %vm404, %v403, %v401
        %v407 = vlaneseq
        %v408 = vshrl.u32 %v407, 7
        %v409 = vsub.s32 7, %v408
        %v410 = vrot.slane %v259, %v409
        %v411 = vlaneseq
        %v412 = vshrl.u32 %v411, 7
        %v413 = vsub.s32 7, %v412
        %v414 = vrot.slane %v260, %v413
        %v415 = vmul.f32 %v405, %v410
        %v416 = vmul.f32 %v406, %v414
        %417 = vrot.lane.b32.xlu0 %v292, 111
        %v418 = vpop.permute.xlu0 %417
        %419 = vrot.lane.b32.xlu0 %v294, 111
        %v420 = vpop.permute.xlu0 %419
        %vm421 = vcmp.lt.s32.totalorder %v301, 111
        %v422 = vsel %vm421, %v418, %v420
        %v423 = vsel %vm421, %v420, %v418
        %v424 = vlaneseq
        %v425 = vshrl.u32 %v424, 7
        %v426 = vsub.s32 0, %v425
        %v427 = vrot.slane %v261, %v426
        %v428 = vlaneseq
        %v429 = vshrl.u32 %v428, 7
        %v430 = vsub.s32 0, %v429
        %v431 = vrot.slane %v262, %v430
        %v432 = vmul.f32 %v422, %v427
        %v433 = vmul.f32 %v423, %v431
        %v436 = vrot.slane %v330, 4
        %v437 = vrot.slane %v331, 4
        %v442 = vrot.slane %v364, 4
        %v443 = vrot.slane %v365, 4
        %v448 = vrot.slane %v381, 4
        %v449 = vrot.slane %v382, 4
        %v454 = vrot.slane %v415, 4
        %v455 = vrot.slane %v416, 4
        %vm458 = vcmask 1043456
        %v459 = vsel %vm458, %v313, %v436
        %v460 = vsel %vm458, %v314, %v437
        %v461 = vsel %vm458, %v347, %v442
        %v462 = vsel %vm458, %v348, %v443
        %v463 = vsel %vm458, %v292, %v448
        %v464 = vsel %vm458, %v294, %v449
        %v465 = vsel %vm458, %v398, %v454
        %v466 = vsel %vm458, %v399, %v455
        %vm467 = vcmask 293888
        %v469 = vsel %vm467, %v258, 0
        %v472 = vsel %vm458, %v432, 0
        %v475 = vsel %vm458, %v433, 0
        %477 = vmatprep.subr.mxu0 %v460
        %478 = vmatpush1.msra.mxu0 %v459
        %479 = vmatprep.subr.mxu0 %v462
        %480 = vmatpush1.msra.mxu0 %v461
        %481 = vmatprep.subr.mxu0 %v464
        %482 = vmatpush1.msra.mxu0 %v463
        %483 = vmatprep.subr.mxu0 %v466
        %484 = vmatpush1.msra.mxu0 %v465
        %485 = vmatprep.subr.mxu0 %v475
        %486 = vmatpush1.msra.mxu0 %v472
        %487 = vmatprep.subr.mxu0 0.0
        %488 = vmatpush1.msra.mxu0 0.0
        %489 = vmatprep.subr.mxu0 0.0
        %490 = vmatpush1.msra.mxu0 0.0
        %491 = vmatprep.subr.mxu0 0.0
        %492 = vmatpush1.msra.mxu0 0.0
        %493 = vmatprep.subr.mxu0 0.0
        %494 = vmatpush1.msra.mxu0 0.0
        %495 = vmatprep.subr.mxu0 0.0
        %496 = vmatpush1.msra.mxu0 0.0
        %497 = vmatprep.subr.mxu0 0.0
        %498 = vmatpush1.msra.mxu0 0.0
        %499 = vmatprep.subr.mxu0 0.0
        %500 = vmatpush1.msra.mxu0 0.0
        %501 = vmatprep.subr.mxu0 0.0
        %502 = vmatpush1.msra.mxu0 0.0
        %503 = vmatprep.subr.mxu0 0.0
        %504 = vmatpush1.msra.mxu0 0.0
        %505 = vmatprep.subr.mxu0 0.0
        %506 = vmatpush1.msra.mxu0 0.0
        %507 = vmatprep.subr.mxu0 0.0
        %508 = vmatpush1.msra.mxu0 0.0
        %509 = vmatprep.subr.mxu0 0.0
        %510 = vmatpush1.msra.mxu0 0.0
        %511 = vmatprep.subr.mxu0 0.0
        %512 = vmatpush1.msra.mxu0 0.0
        %513 = vmatprep.subr.mxu0 0.0
        %514 = vmatpush1.msra.mxu0 0.0
        %515 = vmatprep.subr.mxu0 0.0
        %516 = vmatpush1.msra.mxu0 0.0
        %517 = vmatprep.subr.mxu0 0.0
        %518 = vmatpush1.msra.mxu0 0.0
        %519 = vmatprep.subr.mxu0 0.0
        %520 = vmatpush1.msra.mxu0 0.0
        %521 = vmatprep.subr.mxu0 0.0
        %522 = vmatpush1.msra.mxu0 0.0
        %523 = vmatprep.subr.mxu0 0.0
        %524 = vmatpush1.msra.mxu0 0.0
        %525 = vmatprep.subr.mxu0 0.0
        %526 = vmatpush1.msra.mxu0 0.0
        %527 = vmatprep.subr.mxu0 0.0
        %528 = vmatpush1.msra.mxu0 0.0
        %529 = vmatprep.subr.mxu0 0.0
        %530 = vmatpush1.msra.mxu0 0.0
        %531 = vmatprep.subr.mxu0 0.0
        %532 = vmatpush1.msra.mxu0 0.0
        %533 = vmatprep.subr.mxu0 0.0
        %534 = vmatpush1.msra.mxu0 0.0
        %535 = vmatprep.subr.mxu0 0.0
        %536 = vmatpush1.msra.mxu0 0.0
        %537 = vmatprep.subr.mxu0 0.0
        %538 = vmatpush1.msra.mxu0 0.0
        %539 = vmatprep.subr.mxu0 0.0
        %540 = vmatpush1.msra.mxu0 0.0
        %541 = vmatprep.mubr.f32.mxu0 0.0
        %542 = vmatmul.mubr.f32.gmra.mrb[0].mxu0 %v469
        %v543 = vpop.f32.mrb[0].mxu0
        %v544 = vadd.f32 0.0, %v543
        %v545 = vpop.f32.mrb[0].mxu0
        %v546 = vadd.f32 0.0, %v545
        %547 = vdwg.mxu0
        %v549 = vcombine.high %v263, %v263
        %v553 = vrot.slane %v544, 4
        %v554 = vrot.slane %v546, 4
        %v557 = vsel %vm458, %v263, %v553
        %v558 = vsel %vm458, %v549, %v554
        %559 = vst [vmem:[%s257] sm:$0xff] %v557
        %560 = vst [vmem:[%s257 + $0x8] sm:$0xff] %v558
        %561 = vst [vmem:[%s257 + $0x10] sm:$0xf] %v553
        %562 = vst [vmem:[%s257 + $0x18] sm:$0xf] %v554
        %p563 = scmp.lt.s32.totalorder %s20, 1
        %s564 = scalar_select %p563, %s20, 1
        %s565 = smul.addr %s564, 4
        %s566 = smul.addr %s565, 8
        %s567 = scalar_lea.vmem %s5, %s566
        // Predicated region
        $region49: #{tpu_custom_call.1} parent=39 // pred_check
          %p568 = pneg %p148
        $region50: #{tpu_custom_call.1} parent=39 // pred_check_branch
          %570 = sbr.rel (%p568) target = $region52
        $region51: #{tpu_custom_call.1} parent=39 // pred_region
          _
        $region52: #{tpu_custom_call.1} parent=39 // pred_fallthru
          _
      $region40: #{tpu_custom_call.1} parent=5 // pred_fallthru
        _
      %p571 = scmp.le.s32.totalorder 2, %s15
      // Predicated region
      $region53: #{tpu_custom_call.1} parent=5 // pred_check
        %p572 = pneg %p571
      $region54: #{tpu_custom_call.1} parent=5 // pred_check_branch
        %574 = sbr.rel (%p572) target = $region56
      $region55: #{tpu_custom_call.1} parent=5 // pred_region
        %s575 = ssub.s32 %s15, 2
        // Predicated region
        $region57: #{tpu_custom_call.1} parent=55 // pred_check
          %p576 = pneg %p154
        $region58: #{tpu_custom_call.1} parent=55 // pred_check_branch
          %578 = sbr.rel (%p576) target = $region60
        $region59: #{tpu_custom_call.1} parent=55 // pred_region
          %p579 = scmp.lt.s32.totalorder %s21, 1
          %s580 = scalar_select %p579, %s21, 1
          %s581 = smul.addr %s580, 4
          %s582 = smul.addr %s581, 8
          %s583 = scalar_lea.vmem %s5, %s582
        $region60: #{tpu_custom_call.1} parent=55 // pred_fallthru
          _
      $region56: #{tpu_custom_call.1} parent=5 // pred_fallthru
        _
    $region6: #{tpu_custom_call.1} parent=1 // loop_footer
      %s19 = sadd.s32 1, %s15
    $region7: #{tpu_custom_call.1} parent=1 // loop_footer_branch
      %14 = sbr.rel target = $region3
    $region8: #{tpu_custom_call.1} parent=1 // loop_exit
      _
    %584 = vsyncpa [#allocation3], 1
    %s585 = scalar_lea.sflag [#allocation3], 1
    %586 = vsyncpa %s585, 1
    %587 = vsyncpa [#allocation5], 1

</llo_original>
